<compile_context>
chip_gen: v6e
topology: v6e:2x2x1
jax: 0.10.0
libtpu: 0.0.40
codegen_flags: <defaults>
</compile_context>

<pallas_src>
import functools

import jax
import jax.numpy as jnp
from jax.experimental import pallas as pl
from jax.experimental.pallas import tpu as pltpu

MAX_ROW_TILE = 2048      # batch tile once batch grows (>90% of HBM roofline)
MIN_PALLAS_BATCH = 256   # below this, launch latency dominates -> plain XLA


def linear_kernel(x_ref, w_ref, b_ref, o_ref):
    # One MXU matmul + bias add per batch tile; everything resident in VMEM.
    x = x_ref[...]                       # (bm, Cin)
    w = w_ref[...]                       # (Cin, Cout)   -- pre-transposed at init
    b = b_ref[...]                       # (1,  Cout)
    acc = jnp.dot(x, w, preferred_element_type=jnp.float32)
    o_ref[...] = (acc + b).astype(o_ref.dtype)


def prepare_params(weight, bias):
    """Init-time layout prep (NOT in the per-call forward path).

    weight: (out, in) as in nn.Linear; bias: (out,).
    Returns W stored as (in, out) and bias as (1, out); no lane padding is
    needed because the kernel writes the true-width output directly.
    """
    w_t = jnp.asarray(weight).T                      # (Cin, Cout)
    b2d = jnp.asarray(bias).reshape(1, -1)           # (1,  Cout)
    return w_t, b2d


def _round_up(n, m):
    return ((n + m - 1) // m) * m


def _pick_bm(B):
    """Batch tile: full B if small; ~B/2 (8-aligned) so the 'parallel' grid has
    >=2 steps (keeps both v7x TensorCores busy); cap at MAX_ROW_TILE."""
    if B > MAX_ROW_TILE:
        return MAX_ROW_TILE
    half = _round_up(pl.cdiv(B, 2), 8)
    return half if half < B else B


@functools.partial(jax.jit, static_argnames=("out_channels", "min_pallas_batch"))
def dummy_model_forward(x, w_t, b2d, *, out_channels,
                        min_pallas_batch=MIN_PALLAS_BATCH):
    """x: (B, in_channels) f32; w_t/b2d from prepare_params().  y = x @ W^T + b."""
    B, c_in = x.shape

    # Tiny-batch bypass: the Pallas round trip (custom-call + DMA setup) costs
    # more than the whole matmul at small B; let XLA fuse it instead.
    if B < min_pallas_batch:
        return (x @ w_t + b2d).astype(x.dtype)

    bm = _pick_bm(B)
    grid = (pl.cdiv(B, bm),)

    itemsize = jnp.dtype(x.dtype).itemsize
    cost = pl.CostEstimate(
        flops=2 * B * c_in * out_channels,
        transcendentals=0,
        bytes_accessed=(x.size + w_t.size + b2d.size + B * out_channels) * itemsize,
    )

    return pl.pallas_call(
        linear_kernel,
        out_shape=jax.ShapeDtypeStruct((B, out_channels), x.dtype),
        grid=grid,
        in_specs=[
            pl.BlockSpec((bm, c_in), lambda i: (i, 0)),              # batch-tiled x
            pl.BlockSpec((c_in, out_channels), lambda i: (0, 0)),    # whole weight (resident)
            pl.BlockSpec((1, out_channels), lambda i: (0, 0)),       # whole bias   (resident)
        ],
        out_specs=pl.BlockSpec((bm, out_channels), lambda i: (i, 0)),
        compiler_params=pltpu.CompilerParams(
            dimension_semantics=("parallel",)),  # v7x: shard grid over 2 TCs
        cost_estimate=cost,
    )(x, w_t, b2d)


if __name__ == "__main__":
    in_channels = 120
    out_channels = 2

    key = jax.random.PRNGKey(0)
    kx1, kx2, kw, kb = jax.random.split(key, 4)

    # Deterministic "PyTorch-like" init: U(-1/sqrt(in), 1/sqrt(in))
    bound = 1.0 / (in_channels ** 0.5)
    weight = jax.random.uniform(kw, (out_channels, in_channels),
                                minval=-bound, maxval=bound, dtype=jnp.float32)
    bias = jax.random.uniform(kb, (out_channels,),
                              minval=-bound, maxval=bound, dtype=jnp.float32)

    # Init-time param prep (transpose hoisted out of forward).
    w_t, b2d = prepare_params(weight, bias)

    # Case 1: tiny batch (the shipped config, B=8).
    #   a) forced through the Pallas kernel (min_pallas_batch=1)  -> kernel runs
    #   b) default dispatcher -> XLA bypass path
    x_small = jax.random.normal(kx1, (8, in_channels), dtype=jnp.float32)
    out_pallas_small = jax.block_until_ready(
        dummy_model_forward(x_small, w_t, b2d,
                            out_channels=out_channels, min_pallas_batch=1))
    out_bypass_small = jax.block_until_ready(
        dummy_model_forward(x_small, w_t, b2d, out_channels=out_channels))
    ref_small = x_small @ weight.T + bias
    assert out_pallas_small.shape == (8, out_channels)
    assert jnp.allclose(out_pallas_small, ref_small, atol=1e-5, rtol=1e-5)
    assert jnp.allclose(out_bypass_small, ref_small, atol=1e-5, rtol=1e-5)

    # Case 2: moderate batch -> Pallas path with a 2-step "parallel" grid
    # (bm = 320, grid = (2,)), exercising the pipelined / multi-core layout.
    x_big = jax.random.normal(kx2, (640, in_channels), dtype=jnp.float32)
    out_big = jax.block_until_ready(
        dummy_model_forward(x_big, w_t, b2d, out_channels=out_channels))
    ref_big = x_big @ weight.T + bias
    assert out_big.shape == (640, out_channels)
    assert jnp.allclose(out_big, ref_big, atol=1e-5, rtol=1e-5)

    print("KERNEL_OK")
</pallas_src>

<mosaic_0001>
module attributes {stable_mosaic.version = 11 : i64} {
  func.func @linear_kernel(%arg0: i32, %arg1: memref<8x120xf32, #tpu.memory_space<vmem>>, %arg2: memref<120x2xf32, #tpu.memory_space<vmem>>, %arg3: memref<1x2xf32, #tpu.memory_space<vmem>>, %arg4: memref<8x2xf32, #tpu.memory_space<vmem>>) attributes {dimension_semantics = [#tpu.dimension_semantics<parallel>], iteration_bounds = array<i64: 1>, scalar_prefetch = 0 : i64, scratch_operands = 0 : i64, tpu.core_type = #tpu.core_type<tc>, window_params = [{transform_indices = @transform_0, window_bounds = array<i64: 8, 120>}, {pipeline_mode = #tpu.pipeline_mode<synchronous>, transform_indices = @transform_1, window_bounds = array<i64: 120, 2>}, {pipeline_mode = #tpu.pipeline_mode<synchronous>, transform_indices = @transform_2, window_bounds = array<i64: 1, 2>}, {transform_indices = @transform_3, window_bounds = array<i64: 8, 2>}]} {
    %c0 = arith.constant 0 : index
    %c0_0 = arith.constant 0 : index
    %0 = vector.load %arg1[%c0, %c0_0] : memref<8x120xf32, #tpu.memory_space<vmem>>, vector<8x120xf32>
    %c0_1 = arith.constant 0 : index
    %c0_2 = arith.constant 0 : index
    %1 = vector.load %arg2[%c0_1, %c0_2] : memref<120x2xf32, #tpu.memory_space<vmem>>, vector<120x2xf32>
    %c0_3 = arith.constant 0 : index
    %c0_4 = arith.constant 0 : index
    %2 = vector.load %arg3[%c0_3, %c0_4] : memref<1x2xf32, #tpu.memory_space<vmem>>, vector<1x2xf32>
    %cst = arith.constant dense<0.000000e+00> : vector<8x2xf32>
    %3 = tpu.matmul %0, %1, %cst {dimension_numbers = #tpu.dot_dimension_numbers<[1], [0], [0], [1], [0, 0, 1, 1], [], []>} : vector<8x120xf32>, vector<120x2xf32>, vector<8x2xf32> -> vector<8x2xf32>
    %4 = vector.broadcast %2 : vector<1x2xf32> to vector<8x2xf32>
    %5 = arith.addf %3, %4 : vector<8x2xf32>
    %c0_5 = arith.constant 0 : index
    %c0_6 = arith.constant 0 : index
    %6 = vector.load %arg4[%c0_5, %c0_6] : memref<8x2xf32, #tpu.memory_space<vmem>>, vector<8x2xf32>
    tpu.vector_store %arg4[%c0_5, %c0_6], %5 {strides = array<i32>} : memref<8x2xf32, #tpu.memory_space<vmem>>, vector<8x2xf32>,
    return
  }
  func.func @transform_0(%arg0: i32) -> (i32, i32) {
    %c0_i32 = arith.constant 0 : i32
    %c0_i32_0 = arith.constant 0 : i32
    return %arg0, %c0_i32 : i32, i32
  }
  func.func @transform_1(%arg0: i32) -> (i32, i32) {
    %c0_i32 = arith.constant 0 : i32
    %c0_i32_0 = arith.constant 0 : i32
    %c0_i32_1 = arith.constant 0 : i32
    return %c0_i32, %c0_i32_0 : i32, i32
  }
  func.func @transform_2(%arg0: i32) -> (i32, i32) {
    %c0_i32 = arith.constant 0 : i32
    %c0_i32_0 = arith.constant 0 : i32
    %c0_i32_1 = arith.constant 0 : i32
    return %c0_i32, %c0_i32_0 : i32, i32
  }
  func.func @transform_3(%arg0: i32) -> (i32, i32) {
    %c0_i32 = arith.constant 0 : i32
    %c0_i32_0 = arith.constant 0 : i32
    return %arg0, %c0_i32 : i32, i32
  }
}

</mosaic_0001>

<llo_original>
// kernel: dummy_model_forward.1
$region0: #{dummy_model_forward.1}
  #allocation0 [shape = 'u32[]', space=smem, size = 0x4, offset = 0x4, fixed_abs, tag = 'smem constant byte address 0x4 - core index']
  #allocation1 [shape = 'u32[144,128]{1,0:T(1,128)}', space=vmem, size = 0x12000, scoped, tag = 'internal scratch']
  %s0 = inlined_call_operand.vmem [shape: f32[8,120], index: 0, kind: input, shape index: {}]
  %s1 = inlined_call_operand.vmem [shape: f32[120,2], index: 1, kind: input, shape index: {}]
  %s2 = inlined_call_operand.vmem [shape: f32[1,2], index: 2, kind: input, shape index: {}]
  %s3 = inlined_call_operand.vmem [shape: f32[8,2], index: 3, kind: output, shape index: {}]
  %s4 = sld [smem:[#allocation0]]
  $region22: #{dummy_model_forward.1} parent=0
    _
  %s6 = ssub.s32 1, %s4
  %s7 = scalar_select 0, %s6, %s4
  // Predicated region
  $region2: #{dummy_model_forward.1} parent=0 // pred_check
    _
  $region3: #{dummy_model_forward.1} parent=0 // pred_check_branch
    %9 = sbr.rel (0) target = $region5
  $region4: #{dummy_model_forward.1} parent=0 // pred_region
    _
  $region5: #{dummy_model_forward.1} parent=0 // pred_fallthru
    _
  // Predicated region
  $region6: #{dummy_model_forward.1} parent=0 // pred_check
    _
  $region7: #{dummy_model_forward.1} parent=0 // pred_check_branch
    %11 = sbr.rel (0) target = $region9
  $region8: #{dummy_model_forward.1} parent=0 // pred_region
    _
  $region9: #{dummy_model_forward.1} parent=0 // pred_fallthru
    _
  // Predicated region
  $region10: #{dummy_model_forward.1} parent=0 // pred_check
    _
  $region11: #{dummy_model_forward.1} parent=0 // pred_check_branch
    %13 = sbr.rel (0) target = $region13
  $region12: #{dummy_model_forward.1} parent=0 // pred_region
    _
  $region13: #{dummy_model_forward.1} parent=0 // pred_fallthru
    _
  %v14 = vld [vmem:[%s0] sm:$0xff]
  %v15 = vld [vmem:[%s1] sm:$0xff]
  %v16 = vld [vmem:[%s1 + $0x8] sm:$0xff]
  %v17 = vld [vmem:[%s1 + $0x10] sm:$0xff]
  %v18 = vld [vmem:[%s1 + $0x18] sm:$0xff]
  %v19 = vld [vmem:[%s1 + $0x20] sm:$0xff]
  %v20 = vld [vmem:[%s1 + $0x28] sm:$0xff]
  %v21 = vld [vmem:[%s1 + $0x30] sm:$0xff]
  %v22 = vld [vmem:[%s1 + $0x38] sm:$0xff]
  %v23 = vld [vmem:[%s1 + $0x40] sm:$0xff]
  %v24 = vld [vmem:[%s1 + $0x48] sm:$0xff]
  %v25 = vld [vmem:[%s1 + $0x50] sm:$0xff]
  %v26 = vld [vmem:[%s1 + $0x58] sm:$0xff]
  %v27 = vld [vmem:[%s1 + $0x60] sm:$0xff]
  %v28 = vld [vmem:[%s1 + $0x68] sm:$0xff]
  %v29 = vld [vmem:[%s1 + $0x70] sm:$0xff]
  %v30 = vld [vmem:[%s2] sm:$0x1]
  %v32 = vlaneseq
  %v33 = vshrl.u32 %v32, 7
  %v34 = vsub.s32 0, %v33
  %v35 = vrot.slane %v30, %v34
  %vm37 = vcmask 982016
  %v39 = vsel %vm37, %v14, 0
  %41 = vmatprep.subr.mxu0 0.0
  %42 = vmatpush1.msra.mxu0 0.0
  %43 = vmatprep.subr.mxu0 0.0
  %44 = vmatpush1.msra.mxu0 %v29
  %45 = vmatprep.subr.mxu0 0.0
  %46 = vmatpush1.msra.mxu0 %v28
  %47 = vmatprep.subr.mxu0 0.0
  %48 = vmatpush1.msra.mxu0 %v27
  %49 = vmatprep.subr.mxu0 0.0
  %50 = vmatpush1.msra.mxu0 %v26
  %51 = vmatprep.subr.mxu0 0.0
  %52 = vmatpush1.msra.mxu0 %v25
  %53 = vmatprep.subr.mxu0 0.0
  %54 = vmatpush1.msra.mxu0 %v24
  %55 = vmatprep.subr.mxu0 0.0
  %56 = vmatpush1.msra.mxu0 %v23
  %57 = vmatprep.subr.mxu0 0.0
  %58 = vmatpush1.msra.mxu0 %v22
  %59 = vmatprep.subr.mxu0 0.0
  %60 = vmatpush1.msra.mxu0 %v21
  %61 = vmatprep.subr.mxu0 0.0
  %62 = vmatpush1.msra.mxu0 %v20
  %63 = vmatprep.subr.mxu0 0.0
  %64 = vmatpush1.msra.mxu0 %v19
  %65 = vmatprep.subr.mxu0 0.0
  %66 = vmatpush1.msra.mxu0 %v18
  %67 = vmatprep.subr.mxu0 0.0
  %68 = vmatpush1.msra.mxu0 %v17
  %69 = vmatprep.subr.mxu0 0.0
  %70 = vmatpush1.msra.mxu0 %v16
  %71 = vmatprep.subr.mxu0 0.0
  %72 = vmatpush1.msra.mxu0 %v15
  %73 = vmatprep.subr.mxu0 0.0
  %74 = vmatpush2.msra.mxu0 0.0
  %75 = vmatprep.subr.mxu0 0.0
  %76 = vmatpush2.msra.mxu0 0.0
  %77 = vmatprep.subr.mxu0 0.0
  %78 = vmatpush2.msra.mxu0 0.0
  %79 = vmatprep.subr.mxu0 0.0
  %80 = vmatpush2.msra.mxu0 0.0
  %81 = vmatprep.subr.mxu0 0.0
  %82 = vmatpush2.msra.mxu0 0.0
  %83 = vmatprep.subr.mxu0 0.0
  %84 = vmatpush2.msra.mxu0 0.0
  %85 = vmatprep.subr.mxu0 0.0
  %86 = vmatpush2.msra.mxu0 0.0
  %87 = vmatprep.subr.mxu0 0.0
  %88 = vmatpush2.msra.mxu0 0.0
  %89 = vmatprep.subr.mxu0 0.0
  %90 = vmatpush2.msra.mxu0 0.0
  %91 = vmatprep.subr.mxu0 0.0
  %92 = vmatpush2.msra.mxu0 0.0
  %93 = vmatprep.subr.mxu0 0.0
  %94 = vmatpush2.msra.mxu0 0.0
  %95 = vmatprep.subr.mxu0 0.0
  %96 = vmatpush2.msra.mxu0 0.0
  %97 = vmatprep.subr.mxu0 0.0
  %98 = vmatpush2.msra.mxu0 0.0
  %99 = vmatprep.subr.mxu0 0.0
  %100 = vmatpush2.msra.mxu0 0.0
  %101 = vmatprep.subr.mxu0 0.0
  %102 = vmatpush2.msra.mxu0 0.0
  %103 = vmatprep.subr.mxu0 0.0
  %104 = vmatpush2.msra.mxu0 0.0
  %105 = vmatprep.mubr.f32.mxu0 0.0
  %106 = vmatmul.mubr.f32.gmra.mxu0 %v39
  %v107 = vpop.f32.mrf.mxu0
  %v108 = vadd.f32 %v35, %v107
  %v109 = vpop.f32.mrf.mxu0
  %110 = vdwg.mxu0
  %vm111 = vcmask 15360
  %112 = vst.msk [vmem:[%s3] sm:$0xff] %vm111, %v108
  // Predicated region
  $region14: #{dummy_model_forward.1} parent=0 // pred_check
    _
  $region15: #{dummy_model_forward.1} parent=0 // pred_check_branch
    %114 = sbr.rel (0) target = $region17
  $region16: #{dummy_model_forward.1} parent=0 // pred_region
    _
  $region17: #{dummy_model_forward.1} parent=0 // pred_fallthru
    _
  // Predicated region
  $region18: #{dummy_model_forward.1} parent=0 // pred_check
    _
  $region19: #{dummy_model_forward.1} parent=0 // pred_check_branch
    %116 = sbr.rel (0) target = $region21
  $region20: #{dummy_model_forward.1} parent=0 // pred_region
    _
  $region21: #{dummy_model_forward.1} parent=0 // pred_fallthru
    _

</llo_original>
